<compile_context>
chip_gen: v5e
topology: v5e:2x2
jax: 0.10.0
libtpu: 0.0.40
codegen_flags: <defaults>
</compile_context>

<pallas_src>
import functools

import jax
import jax.numpy as jnp
from jax.experimental import pallas as pl
from jax.experimental.pallas import tpu as pltpu

IN_DIM = 15
OUT_DIM = 1


def _round_up(n, m):
    return ((n + m - 1) // m) * m


def _mlp_kernel(x_ref, w1_ref, b1_ref, w2r_ref, b2_ref, out_ref, *, bf16_tanh):
    # x_ref  : (TILE_B, IN_DIM)  one contiguous HBM chunk per grid step
    # w1_ref : (IN_DIM, H)       resident across the grid
    # b1_ref : (1, H)            resident
    # w2r_ref: (1, H)            resident (W2 as a row vector)
    # b2_ref : (1, 1) scalar in SMEM
    # out_ref: (TILE_B, 1)
    x = x_ref[...].astype(jnp.float32)                                    # cast in-kernel
    h = jnp.dot(x, w1_ref[...], preferred_element_type=jnp.float32) + b1_ref[...]
    if bf16_tanh:
        # bf16 EUP path (v6e/v7x); correct-but-not-faster on v5e.
        a = jnp.tanh(h.astype(jnp.bfloat16)).astype(jnp.float32)
    else:
        a = jnp.tanh(h)                                                   # (TILE_B, H)
    # 1-wide projection on VPU + lane reduction instead of an N=1 MXU matmul.
    z = jnp.sum(a * w2r_ref[...], axis=-1, keepdims=True) + b2_ref[0, 0]
    out_ref[...] = jax.nn.sigmoid(z).astype(out_ref.dtype)                # (TILE_B, 1)


def single_task_mlp(x, w1, b1, w2, b2, *, tile_b=8192, bf16_tanh=None):
    """Forward of SingleTaskMLP.

    x : any shape reshapable to (-1, 15) (row-major, like torch's x.reshape(-1, 15));
        may be float32 or bfloat16 (bf16 halves HBM traffic, kernel computes in f32)
    w1: (15, H), b1: (H,), w2: (H, 1), b2: (1,)
    returns (B, 1) float32
    """
    xf = x.reshape(-1, IN_DIM)            # natural (B, 15) layout -- no pad, no transpose
    B = xf.shape[0]
    H = w1.shape[1]

    if bf16_tanh is None:
        bf16_tanh = (xf.dtype == jnp.bfloat16)

    # Tile selection: one full-batch block for small B, otherwise big 8-aligned tiles.
    tile = B if B <= tile_b else tile_b
    # v7x has 2 TensorCores; keep >=2 grid steps for large batches so both get work.
    if B >= 2048 and pl.cdiv(B, tile) < 2:
        tile = _round_up(pl.cdiv(B, 2), 8)
    num_tiles = pl.cdiv(B, tile)

    w1f = w1.astype(jnp.float32)                        # (IN_DIM, H)
    b1r = b1.reshape(1, H).astype(jnp.float32)          # (1, H)
    w2r = w2.reshape(1, H).astype(jnp.float32)          # (1, H) row vector
    b2s = b2.reshape(1, 1).astype(jnp.float32)          # SMEM scalar

    itemsize = jnp.dtype(xf.dtype).itemsize
    cost = pl.CostEstimate(
        flops=2 * B * (IN_DIM * H + H * OUT_DIM),
        transcendentals=B * (H + OUT_DIM),
        bytes_accessed=(B * IN_DIM * itemsize            # input stream (f32 or bf16)
                        + B * OUT_DIM * 4                # output
                        + (IN_DIM * H + H + H + 1) * 4), # weights/biases
    )

    kernel = functools.partial(_mlp_kernel, bf16_tanh=bf16_tanh)

    out = pl.pallas_call(
        kernel,
        out_shape=jax.ShapeDtypeStruct((B, OUT_DIM), jnp.float32),
        grid=(num_tiles,),
        in_specs=[
            pl.BlockSpec((tile, IN_DIM), lambda i: (i, 0)),       # x tile (contiguous)
            pl.BlockSpec((IN_DIM, H), lambda i: (0, 0)),          # W1 (resident)
            pl.BlockSpec((1, H), lambda i: (0, 0)),               # b1 (resident)
            pl.BlockSpec((1, H), lambda i: (0, 0)),               # W2 row (resident)
            pl.BlockSpec(memory_space=pltpu.MemorySpace.SMEM),    # b2 scalar
        ],
        out_specs=pl.BlockSpec((tile, OUT_DIM), lambda i: (i, 0)),
        compiler_params=pltpu.CompilerParams(
            dimension_semantics=("parallel",),
            # Big tiles need more than v5e's 16 MiB scoped default; 64 MiB stays
            # within physical VMEM on every generation (v7x: 64 MiB/TC).
            vmem_limit_bytes=64 * 1024 * 1024,
        ),
        cost_estimate=cost,
    )(xf, w1f, b1r, w2r, b2s)

    return out  # (B, 1); trailing partial block rows (if any) never land in `out`


def init_params(key, hidden_unit=32):
    """PyTorch-style nn.Linear init (uniform +/- 1/sqrt(fan_in)),
    weights stored as (in, out)."""
    k1, k2, k3, k4 = jax.random.split(key, 4)
    bound1 = 1.0 / jnp.sqrt(IN_DIM)
    bound2 = 1.0 / jnp.sqrt(hidden_unit)
    w1 = jax.random.uniform(k1, (IN_DIM, hidden_unit), jnp.float32,
                            minval=-bound1, maxval=bound1)
    b1 = jax.random.uniform(k2, (hidden_unit,), jnp.float32,
                            minval=-bound1, maxval=bound1)
    w2 = jax.random.uniform(k3, (hidden_unit, OUT_DIM), jnp.float32,
                            minval=-bound2, maxval=bound2)
    b2 = jax.random.uniform(k4, (OUT_DIM,), jnp.float32,
                            minval=-bound2, maxval=bound2)
    return w1, b1, w2, b2


def reference(x, w1, b1, w2, b2):
    xf = x.reshape(-1, IN_DIM).astype(jnp.float32)
    a = jnp.tanh(xf @ w1 + b1)
    return jax.nn.sigmoid(a @ w2 + b2)


if __name__ == "__main__":
    key = jax.random.PRNGKey(0)
    kx, kp, kx2, kx3 = jax.random.split(key, 4)

    hidden_unit = 32
    w1, b1, w2, b2 = init_params(kp, hidden_unit)

    # Input (2, 4, 15) -> flattened to (8, 15), mirroring the module's x.reshape(-1, 15).
    x = jax.random.normal(kx, (2, 4, IN_DIM), dtype=jnp.float32)
    out = jax.block_until_ready(single_task_mlp(x, w1, b1, w2, b2))
    ref = reference(x, w1, b1, w2, b2)
    assert out.shape == (8, OUT_DIM)
    assert jnp.allclose(out, ref, atol=1e-5, rtol=1e-5)

    # Tail handling: batch not a multiple of 8 / of the tile.
    x2 = jax.random.normal(kx2, (37, IN_DIM), dtype=jnp.float32)
    out2 = jax.block_until_ready(single_task_mlp(x2, w1, b1, w2, b2))
    ref2 = reference(x2, w1, b1, w2, b2)
    assert out2.shape == (37, OUT_DIM)
    assert jnp.allclose(out2, ref2, atol=1e-5, rtol=1e-5)

    # bf16 input path (half the HBM traffic; bf16 tanh auto-enabled) -- relaxed tolerance.
    x3 = jax.random.normal(kx3, (300, IN_DIM), dtype=jnp.float32)
    out3 = jax.block_until_ready(
        single_task_mlp(x3.astype(jnp.bfloat16), w1, b1, w2, b2))
    ref3 = reference(x3.astype(jnp.bfloat16).astype(jnp.float32), w1, b1, w2, b2)
    assert out3.shape == (300, OUT_DIM)
    assert jnp.allclose(out3, ref3, atol=1e-2, rtol=1e-2)

    print("KERNEL_OK")
</pallas_src>

<mosaic_0001>
module attributes {stable_mosaic.version = 11 : i64} {
  func.func @_mlp_kernel(%arg0: i32, %arg1: memref<8x15xf32, #tpu.memory_space<vmem>>, %arg2: memref<15x32xf32, #tpu.memory_space<vmem>>, %arg3: memref<1x32xf32, #tpu.memory_space<vmem>>, %arg4: memref<1x32xf32, #tpu.memory_space<vmem>>, %arg5: memref<1x1xf32, #tpu.memory_space<smem>>, %arg6: memref<8x1xf32, #tpu.memory_space<vmem>>) attributes {dimension_semantics = [#tpu.dimension_semantics<parallel>], iteration_bounds = array<i64: 1>, scalar_prefetch = 0 : i64, scratch_operands = 0 : i64, tpu.core_type = #tpu.core_type<tc>, window_params = [{transform_indices = @transform_0, window_bounds = array<i64: 8, 15>}, {pipeline_mode = #tpu.pipeline_mode<synchronous>, transform_indices = @transform_1, window_bounds = array<i64: 15, 32>}, {pipeline_mode = #tpu.pipeline_mode<synchronous>, transform_indices = @transform_2, window_bounds = array<i64: 1, 32>}, {pipeline_mode = #tpu.pipeline_mode<synchronous>, transform_indices = @transform_3, window_bounds = array<i64: 1, 32>}, {transform_indices = @transform_4, window_bounds = array<i64: 1, 1>}, {transform_indices = @transform_5, window_bounds = array<i64: 8, 1>}]} {
    %c0 = arith.constant 0 : index
    %c0_0 = arith.constant 0 : index
    %0 = vector.load %arg1[%c0, %c0_0] : memref<8x15xf32, #tpu.memory_space<vmem>>, vector<8x15xf32>
    %c0_1 = arith.constant 0 : index
    %c0_2 = arith.constant 0 : index
    %1 = vector.load %arg2[%c0_1, %c0_2] : memref<15x32xf32, #tpu.memory_space<vmem>>, vector<15x32xf32>
    %cst = arith.constant dense<0.000000e+00> : vector<8x32xf32>
    %2 = tpu.matmul %0, %1, %cst {dimension_numbers = #tpu.dot_dimension_numbers<[1], [0], [0], [1], [0, 0, 1, 1], [], []>} : vector<8x15xf32>, vector<15x32xf32>, vector<8x32xf32> -> vector<8x32xf32>
    %c0_3 = arith.constant 0 : index
    %c0_4 = arith.constant 0 : index
    %3 = vector.load %arg3[%c0_3, %c0_4] : memref<1x32xf32, #tpu.memory_space<vmem>>, vector<1x32xf32>
    %4 = vector.broadcast %3 : vector<1x32xf32> to vector<8x32xf32>
    %5 = arith.addf %2, %4 : vector<8x32xf32>
    %6 = math.tanh %5 : vector<8x32xf32>
    %c0_5 = arith.constant 0 : index
    %c0_6 = arith.constant 0 : index
    %7 = vector.load %arg4[%c0_5, %c0_6] : memref<1x32xf32, #tpu.memory_space<vmem>>, vector<1x32xf32>
    %8 = vector.broadcast %7 : vector<1x32xf32> to vector<8x32xf32>
    %9 = arith.mulf %6, %8 : vector<8x32xf32>
    %cst_7 = arith.constant dense<0.000000e+00> : vector<8xf32>
    %10 = vector.multi_reduction <add>, %9, %cst_7 [1] : vector<8x32xf32> to vector<8xf32>
    %11 = vector.shape_cast %10 : vector<8xf32> to vector<8x1xf32>
    %c0_8 = arith.constant 0 : index
    %c0_9 = arith.constant 0 : index
    %12 = memref.load %arg5[%c0_8, %c0_9] : memref<1x1xf32, #tpu.memory_space<smem>>
    %13 = vector.broadcast %12 : f32 to vector<8x1xf32>
    %14 = arith.addf %11, %13 : vector<8x1xf32>
    %15 = arith.negf %14 : vector<8x1xf32>
    %16 = math.exp %15 : vector<8x1xf32>
    %cst_10 = arith.constant 1.000000e+00 : f32
    %17 = vector.broadcast %cst_10 : f32 to vector<8x1xf32>
    %18 = arith.addf %17, %16 : vector<8x1xf32>
    %19 = arith.divf %17, %18 : vector<8x1xf32>
    %c0_11 = arith.constant 0 : index
    %c0_12 = arith.constant 0 : index
    %20 = vector.load %arg6[%c0_11, %c0_12] : memref<8x1xf32, #tpu.memory_space<vmem>>, vector<8x1xf32>
    tpu.vector_store %arg6[%c0_11, %c0_12], %19 {strides = array<i32>} : memref<8x1xf32, #tpu.memory_space<vmem>>, vector<8x1xf32>,
    return
  }
  func.func @transform_0(%arg0: i32) -> (i32, i32) {
    %c0_i32 = arith.constant 0 : i32
    %c0_i32_0 = arith.constant 0 : i32
    return %arg0, %c0_i32 : i32, i32
  }
  func.func @transform_1(%arg0: i32) -> (i32, i32) {
    %c0_i32 = arith.constant 0 : i32
    %c0_i32_0 = arith.constant 0 : i32
    %c0_i32_1 = arith.constant 0 : i32
    return %c0_i32, %c0_i32_0 : i32, i32
  }
  func.func @transform_2(%arg0: i32) -> (i32, i32) {
    %c0_i32 = arith.constant 0 : i32
    %c0_i32_0 = arith.constant 0 : i32
    %c0_i32_1 = arith.constant 0 : i32
    return %c0_i32, %c0_i32_0 : i32, i32
  }
  func.func @transform_3(%arg0: i32) -> (i32, i32) {
    %c0_i32 = arith.constant 0 : i32
    %c0_i32_0 = arith.constant 0 : i32
    %c0_i32_1 = arith.constant 0 : i32
    return %c0_i32, %c0_i32_0 : i32, i32
  }
  func.func @transform_4(%arg0: i32) -> (i32, i32) {
    %c0_i32 = arith.constant 0 : i32
    %c0_i32_0 = arith.constant 0 : i32
    %c0_i32_1 = arith.constant 0 : i32
    return %c0_i32, %c0_i32_0 : i32, i32
  }
  func.func @transform_5(%arg0: i32) -> (i32, i32) {
    %c0_i32 = arith.constant 0 : i32
    %c0_i32_0 = arith.constant 0 : i32
    return %arg0, %c0_i32 : i32, i32
  }
}

</mosaic_0001>

<llo_original>
// kernel: tpu_custom_call.1
$region0: #{tpu_custom_call.1}
  #allocation0 [shape = 'u32[]', space=smem, size = 0x4, offset = 0x4, fixed_abs, tag = 'smem constant byte address 0x4 - core index']
  #allocation1 [shape = 'u32[72,128]{1,0:T(1,128)}', space=vmem, size = 0x9000, scoped, tag = 'internal scratch']
  #allocation2 [shape = 'f32[1,1]{1,0:T(1,128)S(6)}', space=smem, size = 0x200, scoped, tag = 'scoped memory for tpu_custom_call.1']
  %s0 = inlined_call_operand.hbm [shape: f32[8,15], index: 0, kind: input, shape index: {}]
  %s1 = inlined_call_operand.hbm [shape: f32[15,32], index: 1, kind: input, shape index: {}]
  %s2 = inlined_call_operand.vmem [shape: f32[1,32], index: 2, kind: input, shape index: {}]
  %s3 = inlined_call_operand.vmem [shape: f32[1,32], index: 3, kind: input, shape index: {}]
  %s4 = inlined_call_operand.<no memory space> [shape: f32[1,1], index: 4, kind: input, shape index: {}]
  %s5 = inlined_call_operand.vmem [shape: f32[8,1], index: 5, kind: output, shape index: {}]
  %s6 = sld [smem:[#allocation0]]
  $region38: #{tpu_custom_call.1} parent=0
    _
  %s8 = ssub.s32 1, %s6
  %s9 = scalar_select 0, %s8, %s6
  %10 = sst [smem:[#allocation2]] %s4
  $region1: #{tpu_custom_call.1} parent=0
    #allocation3 [shape = 'u8[4096]{0}', space=vmem, size = 0x1000, scoped, tag = 'input window, operand 0, single buffered']
    #allocation4 [shape = 's32[1]{0}', space=sflag, size = 0x4, scoped, tag = 'scoped memory for tpu_custom_call.1']
    #allocation5 [shape = 'u8[8192]{0}', space=vmem, size = 0x2000, scoped, tag = 'input window, operand 1, single buffered']
    #allocation6 [shape = 's32[1]{0}', space=sflag, size = 0x4, scoped, tag = 'scoped memory for tpu_custom_call.1']
    %11 = vsyncpa [#allocation4], 0
    %12 = vsyncpa [#allocation6], 0
    // Predicated region
    $region2: #{tpu_custom_call.1} parent=1 // pred_check
      _
    $region3: #{tpu_custom_call.1} parent=1 // pred_check_branch
      %14 = sbr.rel (0) target = $region5
    $region4: #{tpu_custom_call.1} parent=1 // pred_region
      %16 = vsyncadd [#allocation4], 0
      %s18 = sshll.u32 %s0, 4
      %s19 = int_to_ptr.hbm [resolvable:$true] %s18
      %s20 = sshll.u32 [#allocation3], 4
      %s21 = int_to_ptr.vmem [resolvable:$true] %s20
      %23 = dma.hbm_to_vmem [thread:$0]  %s19, 128, %s21, [#allocation4]
    $region5: #{tpu_custom_call.1} parent=1 // pred_fallthru
      _
    // Predicated region
    $region6: #{tpu_custom_call.1} parent=1 // pred_check
      _
    $region7: #{tpu_custom_call.1} parent=1 // pred_check_branch
      %25 = sbr.rel (0) target = $region9
    $region8: #{tpu_custom_call.1} parent=1 // pred_region
      %27 = vsyncadd [#allocation6], 0
      %s28 = sshll.u32 %s1, 4
      %s29 = int_to_ptr.hbm [resolvable:$true] %s28
      %s30 = sshll.u32 [#allocation5], 4
      %s31 = int_to_ptr.vmem [resolvable:$true] %s30
      %36 = dma.hbm_to_vmem [thread:$0]  %s29, 256, %s31, [#allocation6], 128, 128, 8
    $region9: #{tpu_custom_call.1} parent=1 // pred_fallthru
      _
    // Predicated region
    $region10: #{tpu_custom_call.1} parent=1 // pred_check
      _
    $region11: #{tpu_custom_call.1} parent=1 // pred_check_branch
      %38 = sbr.rel (0) target = $region13
    $region12: #{tpu_custom_call.1} parent=1 // pred_region
      _
    $region13: #{tpu_custom_call.1} parent=1 // pred_fallthru
      _
    // Predicated region
    $region14: #{tpu_custom_call.1} parent=1 // pred_check
      _
    $region15: #{tpu_custom_call.1} parent=1 // pred_check_branch
      %40 = sbr.rel (0) target = $region17
    $region16: #{tpu_custom_call.1} parent=1 // pred_region
      _
    $region17: #{tpu_custom_call.1} parent=1 // pred_fallthru
      _
    // Predicated region
    $region18: #{tpu_custom_call.1} parent=1 // pred_check
      _
    $region19: #{tpu_custom_call.1} parent=1 // pred_check_branch
      %42 = sbr.rel (0) target = $region21
    $region20: #{tpu_custom_call.1} parent=1 // pred_region
      _
    $region21: #{tpu_custom_call.1} parent=1 // pred_fallthru
      _
    // Predicated region
    $region22: #{tpu_custom_call.1} parent=1 // pred_check
      _
    $region23: #{tpu_custom_call.1} parent=1 // pred_check_branch
      %44 = sbr.rel (0) target = $region25
    $region24: #{tpu_custom_call.1} parent=1 // pred_region
      %46 = dma.done [#allocation4], 128
    $region25: #{tpu_custom_call.1} parent=1 // pred_fallthru
      _
    // Predicated region
    $region26: #{tpu_custom_call.1} parent=1 // pred_check
      _
    $region27: #{tpu_custom_call.1} parent=1 // pred_check_branch
      %48 = sbr.rel (0) target = $region29
    $region28: #{tpu_custom_call.1} parent=1 // pred_region
      %50 = dma.done [#allocation6], 256
    $region29: #{tpu_custom_call.1} parent=1 // pred_fallthru
      _
    %v51 = vld [vmem:[#allocation3] sm:$0xff]
    %v52 = vld [vmem:[#allocation5] sm:$0xff]
    %v53 = vld [vmem:[#allocation5 + $0x8] sm:$0x7f]
    %v54 = vld [vmem:[%s2] sm:$0x1]
    %v56 = vperm.slane %v54, 0
    %vm58 = vcmask 121856
    %v60 = vsel %vm58, %v51, 0
    %vm62 = vcmask 1046528
    %v64 = vsel %vm62, %v53, 0
    %66 = vmatpush.msra.mxu0 0.0
    %67 = vmatpush.msra.mxu0 0.0
    %68 = vmatpush.msra.mxu0 0.0
    %69 = vmatpush.msra.mxu0 0.0
    %70 = vmatpush.msra.mxu0 0.0
    %71 = vmatpush.msra.mxu0 0.0
    %72 = vmatpush.msra.mxu0 0.0
    %73 = vmatpush.msra.mxu0 0.0
    %74 = vmatpush.msra.mxu0 0.0
    %75 = vmatpush.msra.mxu0 0.0
    %76 = vmatpush.msra.mxu0 0.0
    %77 = vmatpush.msra.mxu0 0.0
    %78 = vmatpush.msra.mxu0 0.0
    %79 = vmatpush.msra.mxu0 0.0
    %80 = vmatpush.msra.mxu0 %v64
    %81 = vmatpush.msra.mxu0 %v52
    %82 = vmatmul.f32.gmra.mxu0 %v60
    %v83 = vpop.f32.mrf.mxu0
    %v84 = vadd.f32 %v56, %v83
    %85 = vdwg.mxu0
    %v86 = vtanh.pop %v84
    %v87 = vld [vmem:[%s3] sm:$0x1]
    %v89 = vperm.slane %v87, 0
    %v91 = vmul.f32 %v86, %v89
    %vm92 = vcmask 261120
    %v93 = vsel %vm92, %v91, 0.0
    %94 = vadd.xlane.f32.xlu0 %v93
    %v95 = vpop.xlane.xlu0 %94
    %s96 = sld [smem:[#allocation2]]
    %v97 = vstv %s96
    %v98 = vadd.f32 %v95, %v97
    %v99 = vxor.u32 %v98, 2147483648
    %v100 = vmul.f32 %v99, 1.442695
    %v101 = vpow.pop %v100
    %v102 = vadd.f32 %v101, 1.0
    %v103 = vrcp.pop %v102
    %v104 = vmul.f32 %v102, %v103
    %v105 = vsub.f32 1.0, %v104
    %v106 = vmul.f32 %v103, %v105
    %v107 = vadd.f32 %v103, %v106
    %vm108 = vweird.f32 %v102
    %vm109 = vweird.f32 %v103
    %vm110 = vmor %vm108, %vm109
    %v111 = vsel %vm110, %v103, %v107
    %v112 = vand.u32 2147483647, %v102
    %vm113 = vcmp.eq.f32.partialorder %v112, 8.507059e+37
    %v114 = vand.u32 %v102, 2147483648
    %v115 = vor.u32 1.1754944e-38, %v114
    %v116 = vsel %vm113, %v115, %v111
    %v117 = vmul.f32 1.0, %v116
    %vm118 = vcmask 7168
    %119 = vst.msk [vmem:[%s5] sm:$0xff] %vm118, %v117
    // Predicated region
    $region30: #{tpu_custom_call.1} parent=1 // pred_check
      _
    $region31: #{tpu_custom_call.1} parent=1 // pred_check_branch
      %121 = sbr.rel (0) target = $region33
    $region32: #{tpu_custom_call.1} parent=1 // pred_region
      _
    $region33: #{tpu_custom_call.1} parent=1 // pred_fallthru
      _
    // Predicated region
    $region34: #{tpu_custom_call.1} parent=1 // pred_check
      _
    $region35: #{tpu_custom_call.1} parent=1 // pred_check_branch
      %123 = sbr.rel (0) target = $region37
    $region36: #{tpu_custom_call.1} parent=1 // pred_region
      _
    $region37: #{tpu_custom_call.1} parent=1 // pred_fallthru
      _
    %124 = vsyncpa [#allocation4], 1
    %125 = vsyncpa [#allocation6], 1

</llo_original>
